<compile_context>
chip_gen: v5e
topology: v5e:2x2
jax: 0.10.0
libtpu: 0.0.40
codegen_flags: <defaults>
</compile_context>

<pallas_src>
import math
from functools import partial

import jax
import jax.numpy as jnp
from jax.experimental import pallas as pl
from jax.experimental.pallas import tpu as pltpu

_TWO_PI = 2.0 * math.pi


def _round_up(x, m):
    return (x + m - 1) // m * m


def _sine_gen_kernel(*refs, inv_sr, sine_amp, noise_std, vthresh, dim,
                     with_noise):
    # Blocks: f0/noise/out (1, 1, 8, C) time-folded tiles; a/b: 1-D SMEM
    # coefficient tables of length B*dim; carry: (1, 1) VMEM scratch.
    if with_noise:
        f0_ref, a_ref, b_ref, noise_ref, out_ref, carry_ref = refs
    else:
        f0_ref, a_ref, b_ref, out_ref, carry_ref = refs
        noise_ref = None

    bi = pl.program_id(0)
    ti = pl.program_id(1)

    # Reset the fundamental-phase carry at the start of every sequence.
    @pl.when(ti == 0)
    def _():
        carry_ref[...] = jnp.zeros_like(carry_ref)

    rows, C = f0_ref.shape[2], f0_ref.shape[3]          # rows == 8
    f0 = f0_ref[0, 0]                                   # (8, C), time-folded
    rad = jnp.mod(f0 * inv_sr, 1.0)                     # fundamental only

    carry = carry_ref[...]                              # (1, 1)

    # 1) Inclusive prefix sum along lanes within each sublane row (XLU rolls).
    col = jax.lax.broadcasted_iota(jnp.int32, (rows, C), 1)
    acc = rad
    shift = 1
    while shift < C:
        acc = acc + jnp.where(col >= shift, pltpu.roll(acc, shift, 1), 0.0)
        shift *= 2

    # 2) Exclusive prefix of the (mod-1 reduced) row totals along sublanes.
    rt = jnp.mod(acc[:, C - 1:C], 1.0)                  # (8, 1)
    row = jax.lax.broadcasted_iota(jnp.int32, (rows, 1), 0)
    inc = rt
    shift = 1
    while shift < rows:
        inc = inc + jnp.where(row >= shift, pltpu.roll(inc, shift, 0), 0.0)
        shift *= 2
    ep = inc - rt                                       # (8, 1), exclusive

    # 3) Fundamental phase mod 1 (sin only depends on phase mod 1, so the
    #    reference's wrap-shift second cumsum is unnecessary) + carry update.
    phase = jnp.mod(carry + ep + acc, 1.0)              # (8, C)
    carry_ref[...] = jnp.mod(carry + jnp.sum(rt, axis=0, keepdims=True), 1.0)

    ang = phase * _TWO_PI
    s1 = jnp.sin(ang)                                   # 2 EUP ops / sample
    c1 = jnp.cos(ang)

    # 4) Harmonics via angle addition; rand_ini rotation, merge weight and
    #    sine_amp are folded into per-(batch, harmonic) SMEM scalars a, b:
    #      mix = sum_m a_m*sin(m*ang) + b_m*cos(m*ang)
    #          = sine_amp * sum_m w_m * sin(m*ang + 2*pi*rand_ini_m)
    base = bi * dim
    mix = a_ref[base] * s1 + b_ref[base] * c1
    s_m, c_m = s1, c1
    for m in range(1, dim):
        s_n = s_m * c1 + c_m * s1
        c_n = c_m * c1 - s_m * s1
        s_m, c_m = s_n, c_n
        mix = mix + a_ref[base + m] * s_m + b_ref[base + m] * c_m

    voiced = f0 > vthresh
    sig = jnp.where(voiced, mix, 0.0)                   # uv * sine_amp * sines
    if with_noise:
        namp = jnp.where(voiced, noise_std, sine_amp / 3.0)
        sig = sig + namp * noise_ref[0, 0]

    # merge = Linear(dim, 1, bias=False) + tanh (weights already folded in).
    out_ref[0, 0] = jnp.tanh(sig)


def sine_generator(f0, rand_ini, merge_w, *, samp_rate, sine_amp=0.1,
                   noise_std=0.003, voiced_threshold=0.0, with_noise=True,
                   noise_key=None, time_tile=2048):
    """Pallas forward of SineGenerator.

    f0:       (B, L, 1) float32 -- fundamental frequency per sample (Hz)
    rand_ini: (B, 1, dim) float32 -- random initial phase, column 0 == 0
    merge_w:  (1, dim) float32 -- Linear(dim, 1, bias=False) weight
    returns:  (B, L, 1) float32
    """
    B, L, _ = f0.shape
    dim = rand_ini.shape[-1]

    # Time tile: multiple of 1024 so the folded (8, T/8) tile has >=128 lanes.
    T = _round_up(min(int(time_tile), L), 1024)
    L_pad = _round_up(L, T)
    nt = L_pad // T
    C = T // 8

    # Fold time into (B, nt, 8, C): row r of tile t holds samples
    # [t*T + r*C, t*T + (r+1)*C) -- a free row-major reshape after a <T pad.
    f0_flat = f0[..., 0].astype(jnp.float32)
    f0_fold = jnp.pad(f0_flat, ((0, 0), (0, L_pad - L))).reshape(B, nt, 8, C)

    # Per-(batch, harmonic) scalars: a = amp*w*cos(2*pi*r), b = amp*w*sin(...).
    w = merge_w.astype(jnp.float32).reshape(dim)
    r0 = rand_ini.astype(jnp.float32).reshape(B, dim)
    ang0 = _TWO_PI * r0
    a_coef = (sine_amp * w[None, :] * jnp.cos(ang0)).reshape(B * dim)
    b_coef = (sine_amp * w[None, :] * jnp.sin(ang0)).reshape(B * dim)

    kernel = partial(
        _sine_gen_kernel,
        inv_sr=1.0 / float(samp_rate),
        sine_amp=float(sine_amp),
        noise_std=float(noise_std),
        vthresh=float(voiced_threshold),
        dim=int(dim),
        with_noise=bool(with_noise),
    )

    tile_spec = pl.BlockSpec((1, 1, 8, C), lambda b, t: (b, t, 0, 0))
    smem_spec = pl.BlockSpec(memory_space=pltpu.MemorySpace.SMEM)

    inputs = [f0_fold, a_coef, b_coef]
    in_specs = [tile_spec, smem_spec, smem_spec]
    if with_noise:
        key = noise_key if noise_key is not None else jax.random.PRNGKey(0)
        # The merge layer immediately forms sum_k w_k * n_k with iid N(0,1)
        # noise, which is exactly N(0, ||w||^2): draw the pre-merged channel
        # directly (8x less noise HBM traffic, identical distribution).
        w_norm = jnp.sqrt(jnp.sum(w * w))
        noise_fold = w_norm * jax.random.normal(key, (B, nt, 8, C), jnp.float32)
        inputs.append(noise_fold)
        in_specs.append(tile_spec)

    out = pl.pallas_call(
        kernel,
        out_shape=jax.ShapeDtypeStruct((B, nt, 8, C), jnp.float32),
        grid=(B, nt),
        in_specs=in_specs,
        out_specs=tile_spec,
        scratch_shapes=[pltpu.VMEM((1, 1), jnp.float32)],    # phase carry
        compiler_params=pltpu.CompilerParams(
            dimension_semantics=("parallel", "arbitrary")),
    )(*inputs)

    return out.reshape(B, L_pad)[:, :L, None]


def _reference_no_noise(f0, rand_ini, merge_w, samp_rate, sine_amp,
                        voiced_threshold):
    """Pure-JAX port of the PyTorch module with the noise term removed."""
    B, L, _ = f0.shape
    dim = rand_ini.shape[-1]
    harm = jnp.arange(1, dim + 1, dtype=jnp.float32)
    f0_buf = f0 * harm                                          # (B, L, dim)
    rad = jnp.mod(f0_buf / samp_rate, 1.0)
    rad = rad.at[:, 0, :].add(rand_ini[:, 0, :])
    tmp_over_one = jnp.mod(jnp.cumsum(rad, axis=1), 1.0)
    wrap = (tmp_over_one[:, 1:, :] - tmp_over_one[:, :-1, :]) < 0.0
    cumsum_shift = jnp.concatenate(
        [jnp.zeros((B, 1, dim), jnp.float32), -wrap.astype(jnp.float32)],
        axis=1)
    sines = jnp.sin(jnp.cumsum(rad + cumsum_shift, axis=1) * (2.0 * jnp.pi))
    uv = (f0 > voiced_threshold).astype(jnp.float32)
    sw = sines * sine_amp * uv
    return jnp.tanh(jnp.einsum("bld,od->blo", sw, merge_w))


if __name__ == "__main__":
    samp_rate = 16000
    harmonic_num = 7
    dim = harmonic_num + 1
    sine_amp = 0.1
    noise_std = 0.003
    voiced_threshold = 0.0

    # L=2500 with time_tile=1024 -> 3 time tiles, exercising the cross-tile
    # phase carry, the time folding and the ragged pad.
    B, L = 2, 2500

    key = jax.random.PRNGKey(0)
    k_f0, k_mask, k_rand, k_w, k_noise = jax.random.split(key, 5)

    # f0 in Hz with some unvoiced (zero) frames.
    f0 = jax.random.uniform(k_f0, (B, L, 1), minval=80.0, maxval=400.0)
    voiced_mask = (jax.random.uniform(k_mask, (B, L, 1)) > 0.25).astype(jnp.float32)
    f0 = f0 * voiced_mask

    # Random initial phase per (batch, harmonic); fundamental fixed to 0.
    rand_ini = jax.random.uniform(k_rand, (B, 1, dim))
    rand_ini = rand_ini.at[:, :, 0].set(0.0)

    # Deterministic Linear(dim, 1, bias=False) weight (PyTorch-style init).
    bound = 1.0 / math.sqrt(dim)
    merge_w = jax.random.uniform(k_w, (1, dim), minval=-bound, maxval=bound)

    run = partial(sine_generator, samp_rate=samp_rate, sine_amp=sine_amp,
                  noise_std=noise_std, voiced_threshold=voiced_threshold,
                  time_tile=1024)

    # 1) Noise-free pass: validate the fundamental-phase + angle-addition
    #    recurrence and the streaming carry against the PyTorch reference.
    out_det = run(f0, rand_ini, merge_w, with_noise=False)
    jax.block_until_ready(out_det)
    ref_det = _reference_no_noise(f0, rand_ini, merge_w, samp_rate, sine_amp,
                                  voiced_threshold)
    err = float(jnp.max(jnp.abs(out_det - ref_det)))
    assert err < 2e-3, f"mismatch vs reference: {err}"

    # 2) Full forward with (pre-merged) Gaussian noise.
    out = run(f0, rand_ini, merge_w, with_noise=True, noise_key=k_noise)
    jax.block_until_ready(out)
    assert out.shape == (B, L, 1) and out.dtype == jnp.float32
    assert bool(jnp.all(jnp.isfinite(out)))
    print("KERNEL_OK")
</pallas_src>

<mosaic_0001>
module attributes {stable_mosaic.version = 11 : i64} {
  func.func @_sine_gen_kernel(%arg0: i32, %arg1: i32, %arg2: memref<1x1x8x128xf32, #tpu.memory_space<vmem>>, %arg3: memref<16xf32, #tpu.memory_space<smem>>, %arg4: memref<16xf32, #tpu.memory_space<smem>>, %arg5: memref<1x1x8x128xf32, #tpu.memory_space<vmem>>, %arg6: memref<1x1xf32, #tpu.memory_space<vmem>>) attributes {dimension_semantics = [#tpu.dimension_semantics<parallel>, #tpu.dimension_semantics<arbitrary>], iteration_bounds = array<i64: 2, 3>, scalar_prefetch = 0 : i64, scratch_operands = 1 : i64, tpu.core_type = #tpu.core_type<tc>, window_params = [{transform_indices = @transform_0, window_bounds = array<i64: 1, 1, 8, 128>}, {transform_indices = @transform_1, window_bounds = array<i64: 16>}, {transform_indices = @transform_2, window_bounds = array<i64: 16>}, {transform_indices = @transform_3, window_bounds = array<i64: 1, 1, 8, 128>}]} {
    %c0_i32 = arith.constant 0 : i32
    %0 = arith.cmpi eq, %arg1, %c0_i32 : i32
    %1 = arith.extui %0 : i1 to i32
    %c0_i32_0 = arith.constant 0 : i32
    %2 = arith.cmpi ne, %1, %c0_i32_0 : i32
    scf.if %2 {
      %cst_66 = arith.constant 0.000000e+00 : f32
      %284 = vector.broadcast %cst_66 : f32 to vector<1x1xf32>
      %c0_67 = arith.constant 0 : index
      %c0_68 = arith.constant 0 : index
      %285 = vector.load %arg6[%c0_67, %c0_68] : memref<1x1xf32, #tpu.memory_space<vmem>>, vector<1x1xf32>
      tpu.vector_store %arg6[%c0_67, %c0_68], %284 {strides = array<i32>} : memref<1x1xf32, #tpu.memory_space<vmem>>, vector<1x1xf32>,
    } else {
    }
    %c0 = arith.constant 0 : index
    %c0_1 = arith.constant 0 : index
    %c0_2 = arith.constant 0 : index
    %c0_3 = arith.constant 0 : index
    %3 = vector.load %arg2[%c0, %c0_1, %c0_2, %c0_3] : memref<1x1x8x128xf32, #tpu.memory_space<vmem>>, vector<1x1x8x128xf32>
    %4 = vector.shape_cast %3 : vector<1x1x8x128xf32> to vector<8x128xf32>
    %cst = arith.constant 6.250000e-05 : f32
    %5 = vector.broadcast %cst : f32 to vector<8x128xf32>
    %6 = arith.mulf %4, %5 : vector<8x128xf32>
    %cst_4 = arith.constant 1.000000e+00 : f32
    %7 = vector.broadcast %cst_4 : f32 to vector<8x128xf32>
    %8 = arith.remf %6, %7 : vector<8x128xf32>
    %cst_5 = arith.constant 0.000000e+00 : f32
    %9 = vector.broadcast %cst_5 : f32 to vector<8x128xf32>
    %10 = arith.cmpf one, %8, %9 : vector<8x128xf32>
    %cst_6 = arith.constant 0.000000e+00 : f32
    %11 = vector.broadcast %cst_6 : f32 to vector<8x128xf32>
    %12 = arith.cmpf olt, %8, %11 : vector<8x128xf32>
    %cst_7 = arith.constant 0.000000e+00 : f32
    %13 = arith.cmpf olt, %cst_4, %cst_7 : f32
    %14 = vector.broadcast %13 : i1 to vector<8x128xi1>
    %15 = vector.broadcast %14 : vector<8x128xi1> to vector<8x128xi1>
    %16 = arith.xori %12, %15 : vector<8x128xi1>
    %17 = arith.andi %16, %10 : vector<8x128xi1>
    %18 = vector.broadcast %cst_4 : f32 to vector<8x128xf32>
    %19 = arith.addf %8, %18 : vector<8x128xf32>
    %20 = arith.select %17, %19, %8 : vector<8x128xi1>, vector<8x128xf32>
    %c0_8 = arith.constant 0 : index
    %c0_9 = arith.constant 0 : index
    %21 = vector.load %arg6[%c0_8, %c0_9] : memref<1x1xf32, #tpu.memory_space<vmem>>, vector<1x1xf32>
    %22 = tpu.iota {dimensions = array<i32: 1>} : vector<8x128xi32>
    %c1_i32 = arith.constant 1 : i32
    %23 = vector.broadcast %c1_i32 : i32 to vector<8x128xi32>
    %24 = arith.cmpi sge, %22, %23 : vector<8x128xi32>
    %c1_i32_10 = arith.constant 1 : i32
    %25 = tpu.dynamic_rotate %20 by %c1_i32_10 dim 1 : vector<8x128xf32>, i32 -> vector<8x128xf32>
    %cst_11 = arith.constant 0.000000e+00 : f32
    %26 = vector.broadcast %cst_11 : f32 to vector<8x128xf32>
    %27 = arith.select %24, %25, %26 : vector<8x128xi1>, vector<8x128xf32>
    %28 = arith.addf %20, %27 : vector<8x128xf32>
    %c2_i32 = arith.constant 2 : i32
    %29 = vector.broadcast %c2_i32 : i32 to vector<8x128xi32>
    %30 = arith.cmpi sge, %22, %29 : vector<8x128xi32>
    %c2_i32_12 = arith.constant 2 : i32
    %31 = tpu.dynamic_rotate %28 by %c2_i32_12 dim 1 : vector<8x128xf32>, i32 -> vector<8x128xf32>
    %cst_13 = arith.constant 0.000000e+00 : f32
    %32 = vector.broadcast %cst_13 : f32 to vector<8x128xf32>
    %33 = arith.select %30, %31, %32 : vector<8x128xi1>, vector<8x128xf32>
    %34 = arith.addf %28, %33 : vector<8x128xf32>
    %c4_i32 = arith.constant 4 : i32
    %35 = vector.broadcast %c4_i32 : i32 to vector<8x128xi32>
    %36 = arith.cmpi sge, %22, %35 : vector<8x128xi32>
    %c4_i32_14 = arith.constant 4 : i32
    %37 = tpu.dynamic_rotate %34 by %c4_i32_14 dim 1 : vector<8x128xf32>, i32 -> vector<8x128xf32>
    %cst_15 = arith.constant 0.000000e+00 : f32
    %38 = vector.broadcast %cst_15 : f32 to vector<8x128xf32>
    %39 = arith.select %36, %37, %38 : vector<8x128xi1>, vector<8x128xf32>
    %40 = arith.addf %34, %39 : vector<8x128xf32>
    %c8_i32 = arith.constant 8 : i32
    %41 = vector.broadcast %c8_i32 : i32 to vector<8x128xi32>
    %42 = arith.cmpi sge, %22, %41 : vector<8x128xi32>
    %c8_i32_16 = arith.constant 8 : i32
    %43 = tpu.dynamic_rotate %40 by %c8_i32_16 dim 1 : vector<8x128xf32>, i32 -> vector<8x128xf32>
    %cst_17 = arith.constant 0.000000e+00 : f32
    %44 = vector.broadcast %cst_17 : f32 to vector<8x128xf32>
    %45 = arith.select %42, %43, %44 : vector<8x128xi1>, vector<8x128xf32>
    %46 = arith.addf %40, %45 : vector<8x128xf32>
    %c16_i32 = arith.constant 16 : i32
    %47 = vector.broadcast %c16_i32 : i32 to vector<8x128xi32>
    %48 = arith.cmpi sge, %22, %47 : vector<8x128xi32>
    %c16_i32_18 = arith.constant 16 : i32
    %49 = tpu.dynamic_rotate %46 by %c16_i32_18 dim 1 : vector<8x128xf32>, i32 -> vector<8x128xf32>
    %cst_19 = arith.constant 0.000000e+00 : f32
    %50 = vector.broadcast %cst_19 : f32 to vector<8x128xf32>
    %51 = arith.select %48, %49, %50 : vector<8x128xi1>, vector<8x128xf32>
    %52 = arith.addf %46, %51 : vector<8x128xf32>
    %c32_i32 = arith.constant 32 : i32
    %53 = vector.broadcast %c32_i32 : i32 to vector<8x128xi32>
    %54 = arith.cmpi sge, %22, %53 : vector<8x128xi32>
    %c32_i32_20 = arith.constant 32 : i32
    %55 = tpu.dynamic_rotate %52 by %c32_i32_20 dim 1 : vector<8x128xf32>, i32 -> vector<8x128xf32>
    %cst_21 = arith.constant 0.000000e+00 : f32
    %56 = vector.broadcast %cst_21 : f32 to vector<8x128xf32>
    %57 = arith.select %54, %55, %56 : vector<8x128xi1>, vector<8x128xf32>
    %58 = arith.addf %52, %57 : vector<8x128xf32>
    %c64_i32 = arith.constant 64 : i32
    %59 = vector.broadcast %c64_i32 : i32 to vector<8x128xi32>
    %60 = arith.cmpi sge, %22, %59 : vector<8x128xi32>
    %c64_i32_22 = arith.constant 64 : i32
    %61 = tpu.dynamic_rotate %58 by %c64_i32_22 dim 1 : vector<8x128xf32>, i32 -> vector<8x128xf32>
    %cst_23 = arith.constant 0.000000e+00 : f32
    %62 = vector.broadcast %cst_23 : f32 to vector<8x128xf32>
    %63 = arith.select %60, %61, %62 : vector<8x128xi1>, vector<8x128xf32>
    %64 = arith.addf %58, %63 : vector<8x128xf32>
    %65 = vector.extract_strided_slice %64 {offsets = [0, 127], sizes = [8, 1], strides = [1, 1]} : vector<8x128xf32> to vector<8x1xf32>
    %cst_24 = arith.constant 1.000000e+00 : f32
    %66 = vector.broadcast %cst_24 : f32 to vector<8x1xf32>
    %67 = arith.remf %65, %66 : vector<8x1xf32>
    %cst_25 = arith.constant 0.000000e+00 : f32
    %68 = vector.broadcast %cst_25 : f32 to vector<8x1xf32>
    %69 = arith.cmpf one, %67, %68 : vector<8x1xf32>
    %cst_26 = arith.constant 0.000000e+00 : f32
    %70 = vector.broadcast %cst_26 : f32 to vector<8x1xf32>
    %71 = arith.cmpf olt, %67, %70 : vector<8x1xf32>
    %cst_27 = arith.constant 0.000000e+00 : f32
    %72 = arith.cmpf olt, %cst_24, %cst_27 : f32
    %73 = vector.broadcast %72 : i1 to vector<8x1xi1>
    %74 = vector.broadcast %73 : vector<8x1xi1> to vector<8x1xi1>
    %75 = arith.xori %71, %74 : vector<8x1xi1>
    %76 = arith.andi %75, %69 : vector<8x1xi1>
    %77 = vector.broadcast %cst_24 : f32 to vector<8x1xf32>
    %78 = arith.addf %67, %77 : vector<8x1xf32>
    %79 = arith.select %76, %78, %67 : vector<8x1xi1>, vector<8x1xf32>
    %80 = tpu.iota {dimensions = array<i32: 0>} : vector<8x1xi32>
    %c1_i32_28 = arith.constant 1 : i32
    %81 = vector.broadcast %c1_i32_28 : i32 to vector<8x1xi32>
    %82 = arith.cmpi sge, %80, %81 : vector<8x1xi32>
    %c1_i32_29 = arith.constant 1 : i32
    %83 = tpu.dynamic_rotate %79 by %c1_i32_29 dim 0 : vector<8x1xf32>, i32 -> vector<8x1xf32>
    %cst_30 = arith.constant 0.000000e+00 : f32
    %84 = vector.broadcast %cst_30 : f32 to vector<8x1xf32>
    %85 = arith.select %82, %83, %84 : vector<8x1xi1>, vector<8x1xf32>
    %86 = arith.addf %79, %85 : vector<8x1xf32>
    %c2_i32_31 = arith.constant 2 : i32
    %87 = vector.broadcast %c2_i32_31 : i32 to vector<8x1xi32>
    %88 = arith.cmpi sge, %80, %87 : vector<8x1xi32>
    %c2_i32_32 = arith.constant 2 : i32
    %89 = tpu.dynamic_rotate %86 by %c2_i32_32 dim 0 : vector<8x1xf32>, i32 -> vector<8x1xf32>
    %cst_33 = arith.constant 0.000000e+00 : f32
    %90 = vector.broadcast %cst_33 : f32 to vector<8x1xf32>
    %91 = arith.select %88, %89, %90 : vector<8x1xi1>, vector<8x1xf32>
    %92 = arith.addf %86, %91 : vector<8x1xf32>
    %c4_i32_34 = arith.constant 4 : i32
    %93 = vector.broadcast %c4_i32_34 : i32 to vector<8x1xi32>
    %94 = arith.cmpi sge, %80, %93 : vector<8x1xi32>
    %c4_i32_35 = arith.constant 4 : i32
    %95 = tpu.dynamic_rotate %92 by %c4_i32_35 dim 0 : vector<8x1xf32>, i32 -> vector<8x1xf32>
    %cst_36 = arith.constant 0.000000e+00 : f32
    %96 = vector.broadcast %cst_36 : f32 to vector<8x1xf32>
    %97 = arith.select %94, %95, %96 : vector<8x1xi1>, vector<8x1xf32>
    %98 = arith.addf %92, %97 : vector<8x1xf32>
    %99 = arith.subf %98, %79 : vector<8x1xf32>
    %100 = vector.broadcast %21 : vector<1x1xf32> to vector<8x1xf32>
    %101 = arith.addf %100, %99 : vector<8x1xf32>
    %102 = vector.broadcast %101 : vector<8x1xf32> to vector<8x128xf32>
    %103 = arith.addf %102, %64 : vector<8x128xf32>
    %cst_37 = arith.constant 1.000000e+00 : f32
    %104 = vector.broadcast %cst_37 : f32 to vector<8x128xf32>
    %105 = arith.remf %103, %104 : vector<8x128xf32>
    %cst_38 = arith.constant 0.000000e+00 : f32
    %106 = vector.broadcast %cst_38 : f32 to vector<8x128xf32>
    %107 = arith.cmpf one, %105, %106 : vector<8x128xf32>
    %cst_39 = arith.constant 0.000000e+00 : f32
    %108 = vector.broadcast %cst_39 : f32 to vector<8x128xf32>
    %109 = arith.cmpf olt, %105, %108 : vector<8x128xf32>
    %cst_40 = arith.constant 0.000000e+00 : f32
    %110 = arith.cmpf olt, %cst_37, %cst_40 : f32
    %111 = vector.broadcast %110 : i1 to vector<8x128xi1>
    %112 = vector.broadcast %111 : vector<8x128xi1> to vector<8x128xi1>
    %113 = arith.xori %109, %112 : vector<8x128xi1>
    %114 = arith.andi %113, %107 : vector<8x128xi1>
    %115 = vector.broadcast %cst_37 : f32 to vector<8x128xf32>
    %116 = arith.addf %105, %115 : vector<8x128xf32>
    %117 = arith.select %114, %116, %105 : vector<8x128xi1>, vector<8x128xf32>
    %cst_41 = arith.constant dense<0.000000e+00> : vector<1xf32>
    %118 = vector.multi_reduction <add>, %79, %cst_41 [0] : vector<8x1xf32> to vector<1xf32>
    %119 = vector.shape_cast %118 : vector<1xf32> to vector<1x1xf32>
    %120 = arith.addf %21, %119 : vector<1x1xf32>
    %cst_42 = arith.constant 1.000000e+00 : f32
    %121 = vector.broadcast %cst_42 : f32 to vector<1x1xf32>
    %122 = arith.remf %120, %121 : vector<1x1xf32>
    %cst_43 = arith.constant 0.000000e+00 : f32
    %123 = vector.broadcast %cst_43 : f32 to vector<1x1xf32>
    %124 = arith.cmpf one, %122, %123 : vector<1x1xf32>
    %cst_44 = arith.constant 0.000000e+00 : f32
    %125 = vector.broadcast %cst_44 : f32 to vector<1x1xf32>
    %126 = arith.cmpf olt, %122, %125 : vector<1x1xf32>
    %cst_45 = arith.constant 0.000000e+00 : f32
    %127 = arith.cmpf olt, %cst_42, %cst_45 : f32
    %128 = vector.broadcast %127 : i1 to vector<1x1xi1>
    %129 = vector.broadcast %128 : vector<1x1xi1> to vector<1x1xi1>
    %130 = arith.xori %126, %129 : vector<1x1xi1>
    %131 = arith.andi %130, %124 : vector<1x1xi1>
    %132 = vector.broadcast %cst_42 : f32 to vector<1x1xf32>
    %133 = arith.addf %122, %132 : vector<1x1xf32>
    %134 = arith.select %131, %133, %122 : vector<1x1xi1>, vector<1x1xf32>
    %c0_46 = arith.constant 0 : index
    %c0_47 = arith.constant 0 : index
    %135 = vector.load %arg6[%c0_46, %c0_47] : memref<1x1xf32, #tpu.memory_space<vmem>>, vector<1x1xf32>
    tpu.vector_store %arg6[%c0_46, %c0_47], %134 {strides = array<i32>} : memref<1x1xf32, #tpu.memory_space<vmem>>, vector<1x1xf32>,
    %cst_48 = arith.constant 6.28318548 : f32
    %136 = vector.broadcast %cst_48 : f32 to vector<8x128xf32>
    %137 = arith.mulf %117, %136 : vector<8x128xf32>
    %138 = math.sin %137 : vector<8x128xf32>
    %139 = math.cos %137 : vector<8x128xf32>
    %c8_i32_49 = arith.constant 8 : i32
    %140 = arith.muli %arg0, %c8_i32_49 : i32
    %141 = arith.index_cast %140 : i32 to index
    %142 = memref.load %arg3[%141] : memref<16xf32, #tpu.memory_space<smem>>
    %143 = vector.broadcast %142 : f32 to vector<8x128xf32>
    %144 = arith.mulf %143, %138 : vector<8x128xf32>
    %145 = arith.index_cast %140 : i32 to index
    %146 = memref.load %arg4[%145] : memref<16xf32, #tpu.memory_space<smem>>
    %147 = vector.broadcast %146 : f32 to vector<8x128xf32>
    %148 = arith.mulf %147, %139 : vector<8x128xf32>
    %149 = arith.addf %144, %148 : vector<8x128xf32>
    %150 = arith.mulf %138, %139 : vector<8x128xf32>
    %151 = arith.mulf %139, %138 : vector<8x128xf32>
    %152 = arith.addf %150, %151 : vector<8x128xf32>
    %153 = arith.mulf %139, %139 : vector<8x128xf32>
    %154 = arith.mulf %138, %138 : vector<8x128xf32>
    %155 = arith.subf %153, %154 : vector<8x128xf32>
    %c1_i32_50 = arith.constant 1 : i32
    %156 = arith.addi %140, %c1_i32_50 : i32
    %157 = arith.index_cast %156 : i32 to index
    %158 = memref.load %arg3[%157] : memref<16xf32, #tpu.memory_space<smem>>
    %159 = vector.broadcast %158 : f32 to vector<8x128xf32>
    %160 = arith.mulf %159, %152 : vector<8x128xf32>
    %161 = arith.addf %149, %160 : vector<8x128xf32>
    %c1_i32_51 = arith.constant 1 : i32
    %162 = arith.addi %140, %c1_i32_51 : i32
    %163 = arith.index_cast %162 : i32 to index
    %164 = memref.load %arg4[%163] : memref<16xf32, #tpu.memory_space<smem>>
    %165 = vector.broadcast %164 : f32 to vector<8x128xf32>
    %166 = arith.mulf %165, %155 : vector<8x128xf32>
    %167 = arith.addf %161, %166 : vector<8x128xf32>
    %168 = arith.mulf %152, %139 : vector<8x128xf32>
    %169 = arith.mulf %155, %138 : vector<8x128xf32>
    %170 = arith.addf %168, %169 : vector<8x128xf32>
    %171 = arith.mulf %155, %139 : vector<8x128xf32>
    %172 = arith.mulf %152, %138 : vector<8x128xf32>
    %173 = arith.subf %171, %172 : vector<8x128xf32>
    %c2_i32_52 = arith.constant 2 : i32
    %174 = arith.addi %140, %c2_i32_52 : i32
    %175 = arith.index_cast %174 : i32 to index
    %176 = memref.load %arg3[%175] : memref<16xf32, #tpu.memory_space<smem>>
    %177 = vector.broadcast %176 : f32 to vector<8x128xf32>
    %178 = arith.mulf %177, %170 : vector<8x128xf32>
    %179 = arith.addf %167, %178 : vector<8x128xf32>
    %c2_i32_53 = arith.constant 2 : i32
    %180 = arith.addi %140, %c2_i32_53 : i32
    %181 = arith.index_cast %180 : i32 to index
    %182 = memref.load %arg4[%181] : memref<16xf32, #tpu.memory_space<smem>>
    %183 = vector.broadcast %182 : f32 to vector<8x128xf32>
    %184 = arith.mulf %183, %173 : vector<8x128xf32>
    %185 = arith.addf %179, %184 : vector<8x128xf32>
    %186 = arith.mulf %170, %139 : vector<8x128xf32>
    %187 = arith.mulf %173, %138 : vector<8x128xf32>
    %188 = arith.addf %186, %187 : vector<8x128xf32>
    %189 = arith.mulf %173, %139 : vector<8x128xf32>
    %190 = arith.mulf %170, %138 : vector<8x128xf32>
    %191 = arith.subf %189, %190 : vector<8x128xf32>
    %c3_i32 = arith.constant 3 : i32
    %192 = arith.addi %140, %c3_i32 : i32
    %193 = arith.index_cast %192 : i32 to index
    %194 = memref.load %arg3[%193] : memref<16xf32, #tpu.memory_space<smem>>
    %195 = vector.broadcast %194 : f32 to vector<8x128xf32>
    %196 = arith.mulf %195, %188 : vector<8x128xf32>
    %197 = arith.addf %185, %196 : vector<8x128xf32>
    %c3_i32_54 = arith.constant 3 : i32
    %198 = arith.addi %140, %c3_i32_54 : i32
    %199 = arith.index_cast %198 : i32 to index
    %200 = memref.load %arg4[%199] : memref<16xf32, #tpu.memory_space<smem>>
    %201 = vector.broadcast %200 : f32 to vector<8x128xf32>
    %202 = arith.mulf %201, %191 : vector<8x128xf32>
    %203 = arith.addf %197, %202 : vector<8x128xf32>
    %204 = arith.mulf %188, %139 : vector<8x128xf32>
    %205 = arith.mulf %191, %138 : vector<8x128xf32>
    %206 = arith.addf %204, %205 : vector<8x128xf32>
    %207 = arith.mulf %191, %139 : vector<8x128xf32>
    %208 = arith.mulf %188, %138 : vector<8x128xf32>
    %209 = arith.subf %207, %208 : vector<8x128xf32>
    %c4_i32_55 = arith.constant 4 : i32
    %210 = arith.addi %140, %c4_i32_55 : i32
    %211 = arith.index_cast %210 : i32 to index
    %212 = memref.load %arg3[%211] : memref<16xf32, #tpu.memory_space<smem>>
    %213 = vector.broadcast %212 : f32 to vector<8x128xf32>
    %214 = arith.mulf %213, %206 : vector<8x128xf32>
    %215 = arith.addf %203, %214 : vector<8x128xf32>
    %c4_i32_56 = arith.constant 4 : i32
    %216 = arith.addi %140, %c4_i32_56 : i32
    %217 = arith.index_cast %216 : i32 to index
    %218 = memref.load %arg4[%217] : memref<16xf32, #tpu.memory_space<smem>>
    %219 = vector.broadcast %218 : f32 to vector<8x128xf32>
    %220 = arith.mulf %219, %209 : vector<8x128xf32>
    %221 = arith.addf %215, %220 : vector<8x128xf32>
    %222 = arith.mulf %206, %139 : vector<8x128xf32>
    %223 = arith.mulf %209, %138 : vector<8x128xf32>
    %224 = arith.addf %222, %223 : vector<8x128xf32>
    %225 = arith.mulf %209, %139 : vector<8x128xf32>
    %226 = arith.mulf %206, %138 : vector<8x128xf32>
    %227 = arith.subf %225, %226 : vector<8x128xf32>
    %c5_i32 = arith.constant 5 : i32
    %228 = arith.addi %140, %c5_i32 : i32
    %229 = arith.index_cast %228 : i32 to index
    %230 = memref.load %arg3[%229] : memref<16xf32, #tpu.memory_space<smem>>
    %231 = vector.broadcast %230 : f32 to vector<8x128xf32>
    %232 = arith.mulf %231, %224 : vector<8x128xf32>
    %233 = arith.addf %221, %232 : vector<8x128xf32>
    %c5_i32_57 = arith.constant 5 : i32
    %234 = arith.addi %140, %c5_i32_57 : i32
    %235 = arith.index_cast %234 : i32 to index
    %236 = memref.load %arg4[%235] : memref<16xf32, #tpu.memory_space<smem>>
    %237 = vector.broadcast %236 : f32 to vector<8x128xf32>
    %238 = arith.mulf %237, %227 : vector<8x128xf32>
    %239 = arith.addf %233, %238 : vector<8x128xf32>
    %240 = arith.mulf %224, %139 : vector<8x128xf32>
    %241 = arith.mulf %227, %138 : vector<8x128xf32>
    %242 = arith.addf %240, %241 : vector<8x128xf32>
    %243 = arith.mulf %227, %139 : vector<8x128xf32>
    %244 = arith.mulf %224, %138 : vector<8x128xf32>
    %245 = arith.subf %243, %244 : vector<8x128xf32>
    %c6_i32 = arith.constant 6 : i32
    %246 = arith.addi %140, %c6_i32 : i32
    %247 = arith.index_cast %246 : i32 to index
    %248 = memref.load %arg3[%247] : memref<16xf32, #tpu.memory_space<smem>>
    %249 = vector.broadcast %248 : f32 to vector<8x128xf32>
    %250 = arith.mulf %249, %242 : vector<8x128xf32>
    %251 = arith.addf %239, %250 : vector<8x128xf32>
    %c6_i32_58 = arith.constant 6 : i32
    %252 = arith.addi %140, %c6_i32_58 : i32
    %253 = arith.index_cast %252 : i32 to index
    %254 = memref.load %arg4[%253] : memref<16xf32, #tpu.memory_space<smem>>
    %255 = vector.broadcast %254 : f32 to vector<8x128xf32>
    %256 = arith.mulf %255, %245 : vector<8x128xf32>
    %257 = arith.addf %251, %256 : vector<8x128xf32>
    %258 = arith.mulf %242, %139 : vector<8x128xf32>
    %259 = arith.mulf %245, %138 : vector<8x128xf32>
    %260 = arith.addf %258, %259 : vector<8x128xf32>
    %261 = arith.mulf %245, %139 : vector<8x128xf32>
    %262 = arith.mulf %242, %138 : vector<8x128xf32>
    %263 = arith.subf %261, %262 : vector<8x128xf32>
    %c7_i32 = arith.constant 7 : i32
    %264 = arith.addi %140, %c7_i32 : i32
    %265 = arith.index_cast %264 : i32 to index
    %266 = memref.load %arg3[%265] : memref<16xf32, #tpu.memory_space<smem>>
    %267 = vector.broadcast %266 : f32 to vector<8x128xf32>
    %268 = arith.mulf %267, %260 : vector<8x128xf32>
    %269 = arith.addf %257, %268 : vector<8x128xf32>
    %c7_i32_59 = arith.constant 7 : i32
    %270 = arith.addi %140, %c7_i32_59 : i32
    %271 = arith.index_cast %270 : i32 to index
    %272 = memref.load %arg4[%271] : memref<16xf32, #tpu.memory_space<smem>>
    %273 = vector.broadcast %272 : f32 to vector<8x128xf32>
    %274 = arith.mulf %273, %263 : vector<8x128xf32>
    %275 = arith.addf %269, %274 : vector<8x128xf32>
    %cst_60 = arith.constant 0.000000e+00 : f32
    %276 = vector.broadcast %cst_60 : f32 to vector<8x128xf32>
    %277 = arith.cmpf ogt, %4, %276 : vector<8x128xf32>
    %cst_61 = arith.constant 0.000000e+00 : f32
    %278 = vector.broadcast %cst_61 : f32 to vector<8x128xf32>
    %279 = arith.select %277, %275, %278 : vector<8x128xi1>, vector<8x128xf32>
    %280 = math.tanh %279 : vector<8x128xf32>
    %c0_62 = arith.constant 0 : index
    %c0_63 = arith.constant 0 : index
    %c0_64 = arith.constant 0 : index
    %c0_65 = arith.constant 0 : index
    %281 = vector.load %arg5[%c0_62, %c0_63, %c0_64, %c0_65] : memref<1x1x8x128xf32, #tpu.memory_space<vmem>>, vector<1x1x8x128xf32>
    %282 = vector.shape_cast %281 : vector<1x1x8x128xf32> to vector<8x128xf32>
    %283 = vector.shape_cast %280 : vector<8x128xf32> to vector<1x1x8x128xf32>
    tpu.vector_store %arg5[%c0_62, %c0_63, %c0_64, %c0_65], %283 {strides = array<i32>} : memref<1x1x8x128xf32, #tpu.memory_space<vmem>>, vector<1x1x8x128xf32>,
    return
  }
  func.func @transform_0(%arg0: i32, %arg1: i32) -> (i32, i32, i32, i32) {
    %c0_i32 = arith.constant 0 : i32
    %c0_i32_0 = arith.constant 0 : i32
    %c0_i32_1 = arith.constant 0 : i32
    return %arg0, %arg1, %c0_i32, %c0_i32_0 : i32, i32, i32, i32
  }
  func.func @transform_1(%arg0: i32, %arg1: i32) -> i32 {
    %c0_i32 = arith.constant 0 : i32
    %c0_i32_0 = arith.constant 0 : i32
    return %c0_i32 : i32
  }
  func.func @transform_2(%arg0: i32, %arg1: i32) -> i32 {
    %c0_i32 = arith.constant 0 : i32
    %c0_i32_0 = arith.constant 0 : i32
    return %c0_i32 : i32
  }
  func.func @transform_3(%arg0: i32, %arg1: i32) -> (i32, i32, i32, i32) {
    %c0_i32 = arith.constant 0 : i32
    %c0_i32_0 = arith.constant 0 : i32
    %c0_i32_1 = arith.constant 0 : i32
    return %arg0, %arg1, %c0_i32, %c0_i32_0 : i32, i32, i32, i32
  }
}

</mosaic_0001>

<llo_original>
// kernel: tpu_custom_call.1
$region0: #{tpu_custom_call.1}
  #allocation0 [shape = 'u32[]', space=smem, size = 0x4, offset = 0x4, fixed_abs, tag = 'smem constant byte address 0x4 - core index']
  #allocation1 [shape = 'u32[72,128]{1,0:T(1,128)}', space=vmem, size = 0x9000, scoped, tag = 'internal scratch']
  #allocation2 [shape = 'f32[1,1]{1,0:T(1,128)}', space=vmem, size = 0x200, scoped, tag = 'scratch operand']
  %s0 = inlined_call_operand.hbm [shape: f32[2,3,8,128], index: 0, kind: input, shape index: {}]
  %s1 = inlined_call_operand.hbm [shape: f32[16], index: 1, kind: input, shape index: {}]
  %s2 = inlined_call_operand.vmem [shape: f32[16], index: 2, kind: input, shape index: {}]
  %s3 = inlined_call_operand.hbm [shape: f32[2,3,8,128], index: 3, kind: output, shape index: {}]
  %s4 = sld [smem:[#allocation0]]
  $region61: #{tpu_custom_call.1} parent=0
    _
  %s6 = ssub.s32 1, %s4
  %s7 = scalar_select 0, %s6, %s4
  $region1: #{tpu_custom_call.1} parent=0
    #allocation3 [shape = 'u8[8192]{0}', space=vmem, size = 0x2000, scoped, tag = 'input window, operand 0']
    #allocation4 [shape = 's32[2]{0}', space=sflag, size = 0x8, scoped, tag = 'scoped memory for tpu_custom_call.1']
    #allocation5 [shape = 's32[2]{0}', space=sflag, size = 0x8, scoped, tag = 'scoped memory for tpu_custom_call.1']
    #allocation6 [shape = 's32[2]{0}', space=sflag, size = 0x8, scoped, tag = 'scoped memory for tpu_custom_call.1']
    #allocation7 [shape = 's32[2]{0}', space=sflag, size = 0x8, scoped, tag = 'scoped memory for tpu_custom_call.1']
    #allocation8 [shape = 'u8[512]{0}', space=smem, size = 0x200, scoped, tag = 'input window, operand 1, single buffered']
    #allocation9 [shape = 'u8[512]{0}', space=smem, size = 0x200, scoped, tag = 'input window, operand 2, single buffered']
    #allocation10 [shape = 'u8[8192]{0}', space=vmem, size = 0x2000, scoped, tag = 'output window, operand 0']
    %8 = vsyncpa [#allocation4], 0
    %s9 = scalar_lea.sflag [#allocation4], 1
    %10 = vsyncpa %s9, 0
    %11 = vsyncpa [#allocation6], 0
    %12 = vsyncpa [#allocation7], 0
    %13 = vsyncpa [#allocation5], 0
    %s14 = scalar_lea.sflag [#allocation5], 1
    %15 = vsyncpa %s14, 0
    loop: start=0, step=1, limit=8
    $region2: #{tpu_custom_call.1} parent=1 // loop_pre_header
      _
    $region3: #{tpu_custom_call.1} parent=1 // loop_header
      %s17 = sphi 0, %s21
      %p18 = scmp.ge.s32.totalorder %s17, 8
      %s24 = sphi 0, %s36
      %s25 = sphi 0, %s32
      %s26 = sphi 0, %s24
      %s27 = sphi 0, %s25
      %s28 = sphi 0, %s26
      %s29 = sphi 0, %s27
      %s41 = sphi 0, %s43
      %s44 = sphi 0, %s41
      %s45 = sphi 0, %s44
      %s61 = sphi 0, %s45
      %s65 = sphi 0, %s65
      %s67 = sphi 0, %s65
      %s68 = sphi 0, %s67
      %s82 = sphi 0, %s68
      %s86 = sphi 0, %s86
      %s88 = sphi 0, %s86
      %s89 = sphi 0, %s88
      %s103 = sphi 0, %s89
      %s111 = sphi 0, %s113
      %s114 = sphi 0, %s111
      %s115 = sphi 0, %s114
      %s131 = sphi 0, %s115
    $region4: #{tpu_custom_call.1} parent=1 // loop_header_branch
      %20 = sbr.rel (%p18) target = $region8
    $region5: #{tpu_custom_call.1} parent=1 // loop_body
      %s22 = ssub.s32 %s17, 1
      %s23 = ssub.s32 %s17, 2
      %s30 = sadd.s32 1, %s25
      %p31 = scmp.ge.s32.totalorder %s30, 3
      %s32 = scalar_select %p31, 0, %s30
      %s33 = sadd.s32 1, %s24
      %s34 = scalar_select %p31, %s33, %s24
      %p35 = scmp.ge.s32.totalorder %s34, 2
      %s36 = scalar_select %p35, 0, %s34
      %s37 = ssub.s32 %s24, %s36
      %s38 = ssub.s32 %s25, %s32
      %s39 = sor.u32 %s37, %s38
      %p40 = scmp.eq.s32.totalorder %s39, 0
      %s42 = sadd.s32 %s41, 1
      %s43 = scalar_select %p40, %s41, %s42
      %p46 = pneg %p40
      %p47 = scmp.eq.s32.totalorder %s17, 5
      %p48 = por %p46, %p47
      %p49 = scmp.ne.s32.totalorder %s41, %s44
      %p50 = scmp.eq.s32.totalorder %s17, 0
      %p51 = por %p49, %p50
      %p52 = scmp.ne.s32.totalorder %s41, %s44
      %p53 = scmp.eq.s32.totalorder %s22, 5
      %p54 = por %p52, %p53
      %p55 = scmp.ne.s32.totalorder %s44, %s45
      %p56 = scmp.eq.s32.totalorder %s22, 0
      %p57 = por %p55, %p56
      %p58 = scmp.ne.s32.totalorder %s44, %s45
      %p59 = scmp.eq.s32.totalorder %s23, 5
      %p60 = por %p58, %p59
      %p62 = scmp.ne.s32.totalorder %s45, %s61
      %p63 = scmp.eq.s32.totalorder %s23, 0
      %p64 = por %p62, %p63
      %s66 = sadd.s32 %s65, 1
      %p69 = scmp.eq.s32.totalorder %s17, 5
      %p70 = scmp.ne.s32.totalorder %s65, %s67
      %p71 = scmp.eq.s32.totalorder %s17, 0
      %p72 = por %p70, %p71
      %p73 = scmp.ne.s32.totalorder %s65, %s67
      %p74 = scmp.eq.s32.totalorder %s22, 5
      %p75 = por %p73, %p74
      %p76 = scmp.ne.s32.totalorder %s67, %s68
      %p77 = scmp.eq.s32.totalorder %s22, 0
      %p78 = por %p76, %p77
      %p79 = scmp.ne.s32.totalorder %s67, %s68
      %p80 = scmp.eq.s32.totalorder %s23, 5
      %p81 = por %p79, %p80
      %p83 = scmp.ne.s32.totalorder %s68, %s82
      %p84 = scmp.eq.s32.totalorder %s23, 0
      %p85 = por %p83, %p84
      %s87 = sadd.s32 %s86, 1
      %p90 = scmp.eq.s32.totalorder %s17, 5
      %p91 = scmp.ne.s32.totalorder %s86, %s88
      %p92 = scmp.eq.s32.totalorder %s17, 0
      %p93 = por %p91, %p92
      %p94 = scmp.ne.s32.totalorder %s86, %s88
      %p95 = scmp.eq.s32.totalorder %s22, 5
      %p96 = por %p94, %p95
      %p97 = scmp.ne.s32.totalorder %s88, %s89
      %p98 = scmp.eq.s32.totalorder %s22, 0
      %p99 = por %p97, %p98
      %p100 = scmp.ne.s32.totalorder %s88, %s89
      %p101 = scmp.eq.s32.totalorder %s23, 5
      %p102 = por %p100, %p101
      %p104 = scmp.ne.s32.totalorder %s89, %s103
      %p105 = scmp.eq.s32.totalorder %s23, 0
      %p106 = por %p104, %p105
      %s107 = ssub.s32 %s24, %s36
      %s108 = ssub.s32 %s25, %s32
      %s109 = sor.u32 %s107, %s108
      %p110 = scmp.eq.s32.totalorder %s109, 0
      %s112 = sadd.s32 %s111, 1
      %s113 = scalar_select %p110, %s111, %s112
      %p116 = pneg %p110
      %p117 = scmp.eq.s32.totalorder %s17, 5
      %p118 = por %p116, %p117
      %p119 = scmp.ne.s32.totalorder %s111, %s114
      %p120 = scmp.eq.s32.totalorder %s17, 0
      %p121 = por %p119, %p120
      %p122 = scmp.ne.s32.totalorder %s111, %s114
      %p123 = scmp.eq.s32.totalorder %s22, 5
      %p124 = por %p122, %p123
      %p125 = scmp.ne.s32.totalorder %s114, %s115
      %p126 = scmp.eq.s32.totalorder %s22, 0
      %p127 = por %p125, %p126
      %p128 = scmp.ne.s32.totalorder %s114, %s115
      %p129 = scmp.eq.s32.totalorder %s23, 5
      %p130 = por %p128, %p129
      %p132 = scmp.ne.s32.totalorder %s115, %s131
      %p133 = scmp.eq.s32.totalorder %s23, 0
      %p134 = por %p132, %p133
      %p135 = scmp.le.s32.totalorder 1, %s17
      %p136 = scmp.lt.s32.totalorder %s17, 7
      %p137 = pnand %p135, %p136
      %p138 = pneg %p137
      // Predicated region
      $region9: #{tpu_custom_call.1} parent=5 // pred_check
        _
      $region10: #{tpu_custom_call.1} parent=5 // pred_check_branch
        %140 = sbr.rel (%p137) target = $region12
      $region11: #{tpu_custom_call.1} parent=5 // pred_region
        %s141 = ssub.s32 %s17, 1
        // Predicated region
        $region13: #{tpu_custom_call.1} parent=11 // pred_check
          %p142 = pneg %p78
        $region14: #{tpu_custom_call.1} parent=11 // pred_check_branch
          %144 = sbr.rel (%p142) target = $region16
        $region15: #{tpu_custom_call.1} parent=11 // pred_region
          %146 = vsyncadd [#allocation6], 0
          %s148 = sshll.u32 %s1, 4
          %s149 = int_to_ptr.hbm [resolvable:$true] %s148
          %151 = dma.hbm_to_smem %s149, 16, [#allocation8], [#allocation6]
        $region16: #{tpu_custom_call.1} parent=11 // pred_fallthru
          _
        // Predicated region
        $region17: #{tpu_custom_call.1} parent=11 // pred_check
          %p152 = pneg %p99
        $region18: #{tpu_custom_call.1} parent=11 // pred_check_branch
          %154 = sbr.rel (%p152) target = $region20
        $region19: #{tpu_custom_call.1} parent=11 // pred_region
          %156 = vsyncadd [#allocation7], 0
          %s158 = sshll.u32 %s2, 4
          %s159 = int_to_ptr.vmem [resolvable:$true] %s158
          %161 = dma.vmem_to_smem %s159, 16, [#allocation9], [#allocation7]
        $region20: #{tpu_custom_call.1} parent=11 // pred_fallthru
          _
      $region12: #{tpu_custom_call.1} parent=5 // pred_fallthru
        _
      %p162 = scmp.lt.s32.totalorder %s17, 6
      // Predicated region
      $region21: #{tpu_custom_call.1} parent=5 // pred_check
        %p163 = pneg %p162
      $region22: #{tpu_custom_call.1} parent=5 // pred_check_branch
        %165 = sbr.rel (%p163) target = $region24
      $region23: #{tpu_custom_call.1} parent=5 // pred_region
        // Predicated region
        $region25: #{tpu_custom_call.1} parent=23 // pred_check
          %p166 = pneg %p51
        $region26: #{tpu_custom_call.1} parent=23 // pred_check_branch
          %168 = sbr.rel (%p166) target = $region28
        $region27: #{tpu_custom_call.1} parent=23 // pred_region
          %s169 = sand.u32 %s41, 1
          %s170 = scalar_lea.sflag [#allocation4], %s169
          %s171 = sand.u32 %s41, 1
          %s172 = smul.addr %s171, 8
          %s173 = scalar_lea.vmem [#allocation3], %s172
          %175 = vsyncadd %s170, 0
          %s176 = smul.addr %s24, 3
          %s177 = sadd.s32 %s25, %s176
          %s178 = smul.addr %s177, 8
          %s179 = scalar_lea.hbm %s0, %s178
          %s181 = sshll.u32 %s179, 4
          %s182 = int_to_ptr.hbm [resolvable:$true] %s181
          %s183 = sshll.u32 %s173, 4
          %s184 = int_to_ptr.vmem [resolvable:$true] %s183
          %186 = dma.hbm_to_vmem [thread:$0]  %s182, 128, %s184, %s170
        $region28: #{tpu_custom_call.1} parent=23 // pred_fallthru
          _
      $region24: #{tpu_custom_call.1} parent=5 // pred_fallthru
        _
      %p187 = scmp.le.s32.totalorder 1, %s17
      %p188 = scmp.lt.s32.totalorder %s17, 7
      %p189 = pnand %p187, %p188
      %p190 = pneg %p189
      // Predicated region
      $region29: #{tpu_custom_call.1} parent=5 // pred_check
        _
      $region30: #{tpu_custom_call.1} parent=5 // pred_check_branch
        %192 = sbr.rel (%p189) target = $region32
      $region31: #{tpu_custom_call.1} parent=5 // pred_region
        %s193 = ssub.s32 %s17, 1
        %s194 = sand.u32 %s44, 1
        %s195 = scalar_lea.sflag [#allocation4], %s194
        %s196 = sand.u32 %s44, 1
        %s197 = smul.addr %s196, 8
        %s198 = scalar_lea.vmem [#allocation3], %s197
        // Predicated region
        $region33: #{tpu_custom_call.1} parent=31 // pred_check
          %p199 = pneg %p57
        $region34: #{tpu_custom_call.1} parent=31 // pred_check_branch
          %201 = sbr.rel (%p199) target = $region36
        $region35: #{tpu_custom_call.1} parent=31 // pred_region
          %203 = dma.done %s195, 128
        $region36: #{tpu_custom_call.1} parent=31 // pred_fallthru
          _
        // Predicated region
        $region37: #{tpu_custom_call.1} parent=31 // pred_check
          %p204 = pneg %p78
        $region38: #{tpu_custom_call.1} parent=31 // pred_check_branch
          %206 = sbr.rel (%p204) target = $region40
        $region39: #{tpu_custom_call.1} parent=31 // pred_region
          %208 = dma.done [#allocation6], 16
        $region40: #{tpu_custom_call.1} parent=31 // pred_fallthru
          _
        // Predicated region
        $region41: #{tpu_custom_call.1} parent=31 // pred_check
          %p209 = pneg %p99
        $region42: #{tpu_custom_call.1} parent=31 // pred_check_branch
          %211 = sbr.rel (%p209) target = $region44
        $region43: #{tpu_custom_call.1} parent=31 // pred_region
          %213 = dma.done [#allocation7], 16
        $region44: #{tpu_custom_call.1} parent=31 // pred_fallthru
          _
        %214 = sfence
        %s215 = sand.u32 %s44, 1
        %s216 = scalar_lea.sflag [#allocation4], %s215
        %s217 = sand.u32 %s44, 1
        %s218 = smul.addr %s217, 8
        %s219 = scalar_lea.vmem [#allocation3], %s218
        %p220 = pneg %p57
        %p221 = pneg %p54
        %p222 = pneg %p78
        %p223 = pneg %p75
        %p224 = pneg %p99
        %p225 = pneg %p96
        %p226 = pneg %p127
        %p227 = pneg %p124
        %s228 = sand.u32 %s114, 1
        %s229 = scalar_lea.sflag [#allocation5], %s228
        %s230 = sand.u32 %s114, 1
        %s231 = smul.addr %s230, 8
        %s232 = scalar_lea.vmem [#allocation10], %s231
        %p233 = scmp.eq.s32.totalorder %s27, 0
        // Predicated region
        $region45: #{tpu_custom_call.1} parent=31 // pred_check
          %p234 = pneg %p233
        $region46: #{tpu_custom_call.1} parent=31 // pred_check_branch
          %236 = sbr.rel (%p234) target = $region48
        $region47: #{tpu_custom_call.1} parent=31 // pred_region
          %vm237 = vcmask 0
          %238 = vst.msk [vmem:[#allocation2] sm:$0x1] %vm237, 0.0
        $region48: #{tpu_custom_call.1} parent=31 // pred_fallthru
          _
        %v239 = vld [vmem:[%s198] sm:$0xff]
        %v240 = vmul.f32 %v239, 6.25e-05
        %v241 = vand.u32 2147483647, %v240
        %v242 = vrcp.pop 1.0
        %v243 = vsub.f32 1.0, %v242
        %v244 = vmul.f32 %v242, %v243
        %v245 = vadd.f32 %v242, %v244
        %vm246 = vweird.f32 %v242
        %v247 = vsel %vm246, %v242, %v245
        %v248 = vmul.f32 %v241, %v247
        %v249 = vfloor.f32 %v248
        %v250 = vsub.f32 %v241, %v249
        %vm251 = vcmp.eq.f32.partialorder %v250, 1.0
        %v252 = vsel %vm251, 0.0, %v250
        %v253 = vand.u32 2147483647, %v252
        %v254 = vand.u32 %v240, 2147483648
        %v255 = vor.u32 %v253, %v254
        %vm256 = vcmp.ne.f32.partialorder %v255, 0.0
        %vm257 = vcmp.lt.f32.partialorder %v255, 0.0
        %vm258 = vmand %vm257, %vm256
        %v259 = vadd.f32 %v255, 1.0
        %v260 = vsel %vm258, %v259, %v255
        %v261 = vld [vmem:[#allocation2] sm:$0x1]
        %v262 = vlaneseq
        %v263 = vand.u32 %v262, 127
        %vm264 = vcmp.ge.s32.totalorder %v263, 1
        %265 = vrot.lane.b32.xlu0 %v260, 1
        %v266 = vpop.permute.xlu0 %265
        %v267 = vsel %vm264, %v266, 0.0
        %v268 = vadd.f32 %v260, %v267
        %vm269 = vcmp.ge.s32.totalorder %v263, 2
        %270 = vrot.lane.b32.xlu0 %v268, 2
        %v271 = vpop.permute.xlu0 %270
        %v272 = vsel %vm269, %v271, 0.0
        %v273 = vadd.f32 %v268, %v272
        %vm274 = vcmp.ge.s32.totalorder %v263, 4
        %275 = vrot.lane.b32.xlu0 %v273, 4
        %v276 = vpop.permute.xlu0 %275
        %v277 = vsel %vm274, %v276, 0.0
        %v278 = vadd.f32 %v273, %v277
        %vm279 = vcmp.ge.s32.totalorder %v263, 8
        %280 = vrot.lane.b32.xlu0 %v278, 8
        %v281 = vpop.permute.xlu0 %280
        %v282 = vsel %vm279, %v281, 0.0
        %v283 = vadd.f32 %v278, %v282
        %vm284 = vcmp.ge.s32.totalorder %v263, 16
        %285 = vrot.lane.b32.xlu0 %v283, 16
        %v286 = vpop.permute.xlu0 %285
        %v287 = vsel %vm284, %v286, 0.0
        %v288 = vadd.f32 %v283, %v287
        %vm289 = vcmp.ge.s32.totalorder %v263, 32
        %290 = vrot.lane.b32.xlu0 %v288, 32
        %v291 = vpop.permute.xlu0 %290
        %v292 = vsel %vm289, %v291, 0.0
        %v293 = vadd.f32 %v288, %v292
        %vm294 = vcmp.ge.s32.totalorder %v263, 64
        %295 = vrot.lane.b32.xlu0 %v293, 64
        %v296 = vpop.permute.xlu0 %295
        %v297 = vsel %vm294, %v296, 0.0
        %v298 = vadd.f32 %v293, %v297
        %v299 = vand.u32 2147483647, %v298
        %v300 = vrcp.pop 1.0
        %v301 = vsub.f32 1.0, %v300
        %v302 = vmul.f32 %v300, %v301
        %v303 = vadd.f32 %v300, %v302
        %vm304 = vweird.f32 %v300
        %v305 = vsel %vm304, %v300, %v303
        %v306 = vmul.f32 %v299, %v305
        %v307 = vfloor.f32 %v306
        %v308 = vsub.f32 %v299, %v307
        %vm309 = vcmp.eq.f32.partialorder %v308, 1.0
        %v310 = vsel %vm309, 0.0, %v308
        %v311 = vand.u32 2147483647, %v310
        %v312 = vand.u32 %v298, 2147483648
        %v313 = vor.u32 %v311, %v312
        %vm314 = vcmp.ne.f32.partialorder %v313, 0.0
        %vm315 = vcmp.lt.f32.partialorder %v313, 0.0
        %vm316 = vmand %vm315, %vm314
        %v317 = vadd.f32 %v313, 1.0
        %v318 = vsel %vm316, %v317, %v313
        %v319 = vlaneseq
        %v320 = vshrl.u32 %v319, 7
        %vm321 = vcmp.ge.s32.totalorder %v320, 1
        %323 = vrot.lane.b32.xlu0 %v318, 1
        %v324 = vpop.permute.xlu0 %323
        %v326 = vrot.slane %v324, 7
        %v327 = vsel %vm321, %v326, 0.0
        %329 = vrot.lane.b32.xlu0 %v327, 127
        %v330 = vpop.permute.xlu0 %329
        %v332 = vadd.f32 %v318, %v330
        %vm333 = vcmp.ge.s32.totalorder %v320, 2
        %335 = vrot.lane.b32.xlu0 %v332, 1
        %v336 = vpop.permute.xlu0 %335
        %v338 = vrot.slane %v336, 6
        %v339 = vsel %vm333, %v338, 0.0
        %341 = vrot.lane.b32.xlu0 %v339, 127
        %v342 = vpop.permute.xlu0 %341
        %v344 = vadd.f32 %v332, %v342
        %vm345 = vcmp.ge.s32.totalorder %v320, 4
        %347 = vrot.lane.b32.xlu0 %v344, 1
        %v348 = vpop.permute.xlu0 %347
        %v350 = vrot.slane %v348, 4
        %v351 = vsel %vm345, %v350, 0.0
        %353 = vrot.lane.b32.xlu0 %v351, 127
        %v354 = vpop.permute.xlu0 %353
        %v356 = vadd.f32 %v344, %v354
        %v357 = vsub.f32 %v356, %v318
        %v359 = vperm.slane %v261, 0
        %362 = vrot.lane.b32.xlu0 %v357, 1
        %v363 = vpop.permute.xlu0 %362
        %v365 = vadd.f32 %v359, %v363
        %367 = vset.pattern.permute.xlu0 0
        %368 = vperm.xlu0 %367, %v365
        %v369 = vpop.permute.xlu0 %368
        %v371 = vadd.f32 %v369, %v298
        %v372 = vand.u32 2147483647, %v371
        %v373 = vrcp.pop 1.0
        %v374 = vsub.f32 1.0, %v373
        %v375 = vmul.f32 %v373, %v374
        %v376 = vadd.f32 %v373, %v375
        %vm377 = vweird.f32 %v373
        %v378 = vsel %vm377, %v373, %v376
        %v379 = vmul.f32 %v372, %v378
        %v380 = vfloor.f32 %v379
        %v381 = vsub.f32 %v372, %v380
        %vm382 = vcmp.eq.f32.partialorder %v381, 1.0
        %v383 = vsel %vm382, 0.0, %v381
        %v384 = vand.u32 2147483647, %v383
        %v385 = vand.u32 %v371, 2147483648
        %v386 = vor.u32 %v384, %v385
        %vm387 = vcmp.ne.f32.partialorder %v386, 0.0
        %vm388 = vcmp.lt.f32.partialorder %v386, 0.0
        %vm389 = vmand %vm388, %vm387
        %v390 = vadd.f32 %v386, 1.0
        %v391 = vsel %vm389, %v390, %v386
        %vm392 = vcmask 1048568
        %v393 = vsel %vm392, %v318, 0.0
        %v394 = vrot.slane %v393, 4
        %v395 = vadd.f32 %v393, %v394
        %v396 = vrot.slane %v395, 2
        %v397 = vadd.f32 %v395, %v396
        %v398 = vrot.slane %v397, 1
        %v399 = vadd.f32 %v397, %v398
        %401 = vrot.lane.b32.xlu0 %v399, 1
        %v402 = vpop.permute.xlu0 %401
        %v404 = vadd.f32 %v261, %v402
        %v405 = vand.u32 2147483647, %v404
        %v406 = vrcp.pop 1.0
        %v407 = vsub.f32 1.0, %v406
        %v408 = vmul.f32 %v406, %v407
        %v409 = vadd.f32 %v406, %v408
        %vm410 = vweird.f32 %v406
        %v411 = vsel %vm410, %v406, %v409
        %v412 = vmul.f32 %v405, %v411
        %v413 = vfloor.f32 %v412
        %v414 = vsub.f32 %v405, %v413
        %vm415 = vcmp.eq.f32.partialorder %v414, 1.0
        %v416 = vsel %vm415, 0.0, %v414
        %v417 = vand.u32 2147483647, %v416
        %v418 = vand.u32 %v404, 2147483648
        %v419 = vor.u32 %v417, %v418
        %vm420 = vcmp.ne.f32.partialorder %v419, 0.0
        %vm421 = vcmp.lt.f32.partialorder %v419, 0.0
        %vm422 = vmand %vm421, %vm420
        %v423 = vadd.f32 %v419, 1.0
        %v424 = vsel %vm422, %v423, %v419
        %vm425 = vcmask 0
        %426 = vst.msk [vmem:[#allocation2] sm:$0x1] %vm425, %v424
        %v427 = vmul.f32 %v391, 6.2831855
        %v428 = vand.u32 2147483647, %v427
        %vm429 = vcmp.le.f32.partialorder %v428, 0.7853982
        %vm430 = vcmp.lt.s32.totalorder %v427, 0
        %v431 = vand.u32 %v427, 2139095040
        %v432 = vshrl.u32 %v431, 23
        %v433 = vsub.s32 %v432, 127
        %v434 = vand.u32 2147483647, %v427
        %v435 = vand.u32 %v434, 8388607
        %v436 = vor.u32 %v435, 8388608
        %v437 = vsub.s32 0, %v436
        %v438 = vadd.s32 %v433, 1
        %vm439 = vcmp.gt.s32.totalorder %v438, 0
        %v440 = vsel %vm439, %v438, 0
        %v441 = vshrl.u32 %v440, 5
        %v442 = vand.u32 %v440, 31
        %v443 = vsub.s32 32, %v442
        %v444 = vshrl.u32 683565275, %v443
        %v445 = vshll.u32 683565275, %v442
        %v446 = vshrl.u32 2475754826, %v443
        %v447 = vor.u32 %v445, %v446
        %v448 = vshll.u32 2475754826, %v442
        %v449 = vshrl.u32 2131351028, %v443
        %v450 = vor.u32 %v448, %v449
        %v451 = vshll.u32 2131351028, %v442
        %v452 = vshrl.u32 2102212464, %v443
        %v453 = vor.u32 %v451, %v452
        %v454 = vshll.u32 2102212464, %v442
        %v455 = vshrl.u32 920167782, %v443
        %v456 = vor.u32 %v454, %v455
        %v457 = vshll.u32 920167782, %v442
        %v458 = vshrl.u32 1326507024, %v443
        %v459 = vor.u32 %v457, %v458
        %vm460 = vcmp.lt.s32.totalorder %v441, 1
        %vm461 = vcmp.lt.s32.totalorder %v441, 2
        %vm462 = vcmp.lt.s32.totalorder %v441, 3
        %vm463 = vcmp.lt.s32.totalorder %v441, 4
        %v464 = vsel %vm460, %v444, %v447
        %v465 = vsel %vm463, %v453, 2102212464
        %v466 = vsel %vm462, %v450, %v465
        %v467 = vsel %vm461, %v464, %v466
        %v468 = vsel %vm460, %v447, %v450
        %v469 = vsel %vm463, %v456, 920167782
        %v470 = vsel %vm462, %v453, %v469
        %v471 = vsel %vm461, %v468, %v470
        %v472 = vsel %vm460, %v450, %v453
        %v473 = vsel %vm463, %v459, 1326507024
        %v474 = vsel %vm462, %v456, %v473
        %v475 = vsel %vm461, %v472, %v474
        %v476 = vshll.u32 %v436, 8
        %v477 = vand.u32 %v476, 65535
        %v478 = vshrl.u32 %v476, 16
        %v479 = vand.u32 %v475, 65535
        %v480 = vshrl.u32 %v475, 16
        %v481 = vmul.u32 %v477, %v479
        %v482 = vmul.u32 %v477, %v480
        %v483 = vmul.u32 %v478, %v479
        %v484 = vmul.u32 %v478, %v480
        %v485 = vshll.u32 %v482, 16
        %v486 = vshrl.u32 %v482, 16
        %v487 = vshll.u32 %v483, 16
        %v488 = vshrl.u32 %v483, 16
        %vm489 = vc.u32 %v481, %v485
        %v490 = vsel %vm489, 1, 0
        %v491 = vadd.s32 %v481, %v485
        %v492 = vadd.s32 %v484, %v490
        %vm493 = vc.u32 %v491, %v487
        %v494 = vsel %vm493, 1, 0
        %v495 = vadd.s32 %v491, %v487
        %v496 = vadd.s32 %v492, %v494
        %v497 = vadd.s32 %v496, %v486
        %v498 = vadd.s32 %v497, %v488
        %v499 = vand.u32 %v476, 65535
        %v500 = vshrl.u32 %v476, 16
        %v501 = vand.u32 %v471, 65535
        %v502 = vshrl.u32 %v471, 16
        %v503 = vmul.u32 %v499, %v501
        %v504 = vmul.u32 %v499, %v502
        %v505 = vmul.u32 %v500, %v501
        %v506 = vmul.u32 %v500, %v502
        %v507 = vshll.u32 %v504, 16
        %v508 = vshrl.u32 %v504, 16
        %v509 = vshll.u32 %v505, 16
        %v510 = vshrl.u32 %v505, 16
        %vm511 = vc.u32 %v503, %v507
        %v512 = vsel %vm511, 1, 0
        %v513 = vadd.s32 %v503, %v507
        %v514 = vadd.s32 %v506, %v512
        %vm515 = vc.u32 %v513, %v509
        %v516 = vsel %vm515, 1, 0
        %v517 = vadd.s32 %v513, %v509
        %v518 = vadd.s32 %v514, %v516
        %v519 = vadd.s32 %v518, %v508
        %v520 = vadd.s32 %v519, %v510
        %v521 = vmul.u32 %v476, %v467
        %v522 = vadd.s32 %v498, %v517
        %vm523 = vc.u32 %v498, %v517
        %v524 = vadd.s32 %v520, 1
        %v525 = vsel %vm523, %v524, %v520
        %v526 = vadd.s32 %v521, %v525
        %v527 = vadd.s32 %v526, 536870912
        %v528 = vshrl.u32 %v527, 30
        %v529 = vshll.u32 %v528, 30
        %v530 = vsub.s32 %v526, %v529
        %vm531 = vcmp.lt.s32.totalorder %v530, 0
        %v532 = vsub.s32 0, %v530
        %v533 = vsel %vm531, %v532, %v530
        %v534 = vclz %v533
        %v535 = vsub.s32 %v534, 2
        %vm536 = vcmp.gt.s32.totalorder 0, %v535
        %v537 = vsel %vm536, 0, %v535
        %v538 = vsub.s32 32, %v537
        %v539 = vshll.u32 %v530, %v537
        %v540 = vshrl.u32 %v522, %v538
        %v541 = vor.u32 %v539, %v540
        %v542 = vsub.s32 4294967266, %v537
        %v543 = vadd.s32 %v542, 127
        %v544 = vshll.u32 %v543, 23
        %v545 = vor.u32 4788187, %v544
        %v546 = vand.u32 2147483647, %v545
        %v548 = vcvt.s32.f32 %v541
        %v549 = vmul.f32 %v548, %v546
        %v550 = vxor.u32 %v549, 2147483648
        %v551 = vsel %vm430, %v550, %v549
        %v552 = vsub.s32 4, %v528
        %v553 = vsel %vm430, %v552, %v528
        %v554 = vsel %vm429, %v427, %v551
        %v555 = vsel %vm429, 0, %v553
        %v556 = vmul.f32 %v554, %v554
        %v557 = vmul.f32 %v556, -0.001358992
        %v558 = vadd.f32 %v557, 0.041655596
        %v559 = vmul.f32 %v556, %v558
        %v560 = vadd.f32 %v559, -0.4999988
        %v561 = vmul.f32 %v556, %v560
        %v562 = vadd.f32 1.0, %v561
        %v563 = vmul.f32 %v554, %v554
        %v564 = vmul.f32 %v563, -0.00019511016
        %v565 = vadd.f32 %v564, 0.008332121
        %v566 = vmul.f32 %v563, %v565
        %v567 = vadd.f32 %v566, -0.16666654
        %v568 = vmul.f32 %v563, %v567
        %v569 = vadd.f32 %v568, 1.0
        %v570 = vmul.f32 %v569, %v554
        %vm571 = vweird.f32 %v427
        %v572 = vadd.s32 %v555, 3
        %v573 = vand.u32 %v572, 3
        %vm574 = vcmp.lt.s32.totalorder %v573, 2
        %vm575 = vcmp.eq.s32.totalorder %v573, 0
        %v576 = vxor.u32 %v570, 2147483648
        %v577 = vsel %vm575, %v562, %v576
        %vm578 = vcmp.eq.s32.totalorder %v573, 2
        %v579 = vxor.u32 %v562, 2147483648
        %v580 = vsel %vm578, %v579, %v570
        %v581 = vsel %vm574, %v577, %v580
        %v582 = vsel %vm571, nan, %v581
        %v583 = vand.u32 2147483647, %v427
        %vm584 = vcmp.le.f32.partialorder %v583, 0.7853982
        %vm585 = vcmp.lt.s32.totalorder %v427, 0
        %v586 = vand.u32 %v427, 2139095040
        %v587 = vshrl.u32 %v586, 23
        %v588 = vsub.s32 %v587, 127
        %v589 = vand.u32 2147483647, %v427
        %v590 = vand.u32 %v589, 8388607
        %v591 = vor.u32 %v590, 8388608
        %v592 = vsub.s32 0, %v591
        %v593 = vadd.s32 %v588, 1
        %vm594 = vcmp.gt.s32.totalorder %v593, 0
        %v595 = vsel %vm594, %v593, 0
        %v596 = vshrl.u32 %v595, 5
        %v597 = vand.u32 %v595, 31
        %v598 = vsub.s32 32, %v597
        %v599 = vshrl.u32 683565275, %v598
        %v600 = vshll.u32 683565275, %v597
        %v601 = vshrl.u32 2475754826, %v598
        %v602 = vor.u32 %v600, %v601
        %v603 = vshll.u32 2475754826, %v597
        %v604 = vshrl.u32 2131351028, %v598
        %v605 = vor.u32 %v603, %v604
        %v606 = vshll.u32 2131351028, %v597
        %v607 = vshrl.u32 2102212464, %v598
        %v608 = vor.u32 %v606, %v607
        %v609 = vshll.u32 2102212464, %v597
        %v610 = vshrl.u32 920167782, %v598
        %v611 = vor.u32 %v609, %v610
        %v612 = vshll.u32 920167782, %v597
        %v613 = vshrl.u32 1326507024, %v598
        %v614 = vor.u32 %v612, %v613
        %vm615 = vcmp.lt.s32.totalorder %v596, 1
        %vm616 = vcmp.lt.s32.totalorder %v596, 2
        %vm617 = vcmp.lt.s32.totalorder %v596, 3
        %vm618 = vcmp.lt.s32.totalorder %v596, 4
        %v619 = vsel %vm615, %v599, %v602
        %v620 = vsel %vm618, %v608, 2102212464
        %v621 = vsel %vm617, %v605, %v620
        %v622 = vsel %vm616, %v619, %v621
        %v623 = vsel %vm615, %v602, %v605
        %v624 = vsel %vm618, %v611, 920167782
        %v625 = vsel %vm617, %v608, %v624
        %v626 = vsel %vm616, %v623, %v625
        %v627 = vsel %vm615, %v605, %v608
        %v628 = vsel %vm618, %v614, 1326507024
        %v629 = vsel %vm617, %v611, %v628
        %v630 = vsel %vm616, %v627, %v629
        %v631 = vshll.u32 %v591, 8
        %v632 = vand.u32 %v631, 65535
        %v633 = vshrl.u32 %v631, 16
        %v634 = vand.u32 %v630, 65535
        %v635 = vshrl.u32 %v630, 16
        %v636 = vmul.u32 %v632, %v634
        %v637 = vmul.u32 %v632, %v635
        %v638 = vmul.u32 %v633, %v634
        %v639 = vmul.u32 %v633, %v635
        %v640 = vshll.u32 %v637, 16
        %v641 = vshrl.u32 %v637, 16
        %v642 = vshll.u32 %v638, 16
        %v643 = vshrl.u32 %v638, 16
        %vm644 = vc.u32 %v636, %v640
        %v645 = vsel %vm644, 1, 0
        %v646 = vadd.s32 %v636, %v640
        %v647 = vadd.s32 %v639, %v645
        %vm648 = vc.u32 %v646, %v642
        %v649 = vsel %vm648, 1, 0
        %v650 = vadd.s32 %v646, %v642
        %v651 = vadd.s32 %v647, %v649
        %v652 = vadd.s32 %v651, %v641
        %v653 = vadd.s32 %v652, %v643
        %v654 = vand.u32 %v631, 65535
        %v655 = vshrl.u32 %v631, 16
        %v656 = vand.u32 %v626, 65535
        %v657 = vshrl.u32 %v626, 16
        %v658 = vmul.u32 %v654, %v656
        %v659 = vmul.u32 %v654, %v657
        %v660 = vmul.u32 %v655, %v656
        %v661 = vmul.u32 %v655, %v657
        %v662 = vshll.u32 %v659, 16
        %v663 = vshrl.u32 %v659, 16
        %v664 = vshll.u32 %v660, 16
        %v665 = vshrl.u32 %v660, 16
        %vm666 = vc.u32 %v658, %v662
        %v667 = vsel %vm666, 1, 0
        %v668 = vadd.s32 %v658, %v662
        %v669 = vadd.s32 %v661, %v667
        %vm670 = vc.u32 %v668, %v664
        %v671 = vsel %vm670, 1, 0
        %v672 = vadd.s32 %v668, %v664
        %v673 = vadd.s32 %v669, %v671
        %v674 = vadd.s32 %v673, %v663
        %v675 = vadd.s32 %v674, %v665
        %v676 = vmul.u32 %v631, %v622
        %v677 = vadd.s32 %v653, %v672
        %vm678 = vc.u32 %v653, %v672
        %v679 = vadd.s32 %v675, 1
        %v680 = vsel %vm678, %v679, %v675
        %v681 = vadd.s32 %v676, %v680
        %v682 = vadd.s32 %v681, 536870912
        %v683 = vshrl.u32 %v682, 30
        %v684 = vshll.u32 %v683, 30
        %v685 = vsub.s32 %v681, %v684
        %vm686 = vcmp.lt.s32.totalorder %v685, 0
        %v687 = vsub.s32 0, %v685
        %v688 = vsel %vm686, %v687, %v685
        %v689 = vclz %v688
        %v690 = vsub.s32 %v689, 2
        %vm691 = vcmp.gt.s32.totalorder 0, %v690
        %v692 = vsel %vm691, 0, %v690
        %v693 = vsub.s32 32, %v692
        %v694 = vshll.u32 %v685, %v692
        %v695 = vshrl.u32 %v677, %v693
        %v696 = vor.u32 %v694, %v695
        %v697 = vsub.s32 4294967266, %v692
        %v698 = vadd.s32 %v697, 127
        %v699 = vshll.u32 %v698, 23
        %v700 = vor.u32 4788187, %v699
        %v701 = vand.u32 2147483647, %v700
        %v703 = vcvt.s32.f32 %v696
        %v704 = vmul.f32 %v703, %v701
        %v705 = vxor.u32 %v704, 2147483648
        %v706 = vsel %vm585, %v705, %v704
        %v707 = vsub.s32 4, %v683
        %v708 = vsel %vm585, %v707, %v683
        %v709 = vsel %vm584, %v427, %v706
        %v710 = vsel %vm584, 0, %v708
        %v711 = vmul.f32 %v709, %v709
        %v712 = vmul.f32 %v711, -0.001358992
        %v713 = vadd.f32 %v712, 0.041655596
        %v714 = vmul.f32 %v711, %v713
        %v715 = vadd.f32 %v714, -0.4999988
        %v716 = vmul.f32 %v711, %v715
        %v717 = vadd.f32 1.0, %v716
        %v718 = vmul.f32 %v709, %v709
        %v719 = vmul.f32 %v718, -0.00019511016
        %v720 = vadd.f32 %v719, 0.008332121
        %v721 = vmul.f32 %v718, %v720
        %v722 = vadd.f32 %v721, -0.16666654
        %v723 = vmul.f32 %v718, %v722
        %v724 = vadd.f32 %v723, 1.0
        %v725 = vmul.f32 %v724, %v709
        %vm726 = vweird.f32 %v427
        %v727 = vand.u32 %v710, 3
        %vm728 = vcmp.lt.s32.totalorder %v727, 2
        %vm729 = vcmp.eq.s32.totalorder %v727, 0
        %v730 = vxor.u32 %v725, 2147483648
        %v731 = vsel %vm729, %v717, %v730
        %vm732 = vcmp.eq.s32.totalorder %v727, 2
        %v733 = vxor.u32 %v717, 2147483648
        %v734 = vsel %vm732, %v733, %v725
        %v735 = vsel %vm728, %v731, %v734
        %v736 = vsel %vm726, nan, %v735
        %s737 = smul.u32 %s26, 8
        %s738 = sld [smem:[#allocation8 + %s737]]
        %v739 = vstv %s738
        %v740 = vmul.f32 %v739, %v582
        %s741 = sld [smem:[#allocation9 + %s737]]
        %v742 = vstv %s741
        %v743 = vmul.f32 %v742, %v736
        %v744 = vadd.f32 %v740, %v743
        %v745 = vmul.f32 %v582, %v736
        %v746 = vadd.f32 %v745, %v745
        %v747 = vmul.f32 %v736, %v736
        %v748 = vmul.f32 %v582, %v582
        %v749 = vsub.f32 %v747, %v748
        %s750 = sadd.s32 %s737, 1
        %s751 = sld [smem:[#allocation8 + %s750]]
        %v752 = vstv %s751
        %v753 = vmul.f32 %v752, %v746
        %v754 = vadd.f32 %v744, %v753
        %s755 = sld [smem:[#allocation9 + %s750]]
        %v756 = vstv %s755
        %v757 = vmul.f32 %v756, %v749
        %v758 = vadd.f32 %v754, %v757
        %v759 = vmul.f32 %v746, %v736
        %v760 = vmul.f32 %v749, %v582
        %v761 = vadd.f32 %v759, %v760
        %v762 = vmul.f32 %v749, %v736
        %v763 = vmul.f32 %v746, %v582
        %v764 = vsub.f32 %v762, %v763
        %s765 = sadd.s32 %s737, 2
        %s766 = sld [smem:[#allocation8 + %s765]]
        %v767 = vstv %s766
        %v768 = vmul.f32 %v767, %v761
        %v769 = vadd.f32 %v758, %v768
        %s770 = sld [smem:[#allocation9 + %s765]]
        %v771 = vstv %s770
        %v772 = vmul.f32 %v771, %v764
        %v773 = vadd.f32 %v769, %v772
        %v774 = vmul.f32 %v761, %v736
        %v775 = vmul.f32 %v764, %v582
        %v776 = vadd.f32 %v774, %v775
        %v777 = vmul.f32 %v764, %v736
        %v778 = vmul.f32 %v761, %v582
        %v779 = vsub.f32 %v777, %v778
        %s780 = sadd.s32 %s737, 3
        %s781 = sld [smem:[#allocation8 + %s780]]
        %v782 = vstv %s781
        %v783 = vmul.f32 %v782, %v776
        %v784 = vadd.f32 %v773, %v783
        %s785 = sld [smem:[#allocation9 + %s780]]
        %v786 = vstv %s785
        %v787 = vmul.f32 %v786, %v779
        %v788 = vadd.f32 %v784, %v787
        %v789 = vmul.f32 %v776, %v736
        %v790 = vmul.f32 %v779, %v582
        %v791 = vadd.f32 %v789, %v790
        %v792 = vmul.f32 %v779, %v736
        %v793 = vmul.f32 %v776, %v582
        %v794 = vsub.f32 %v792, %v793
        %s795 = sadd.s32 %s737, 4
        %s796 = sld [smem:[#allocation8 + %s795]]
        %v797 = vstv %s796
        %v798 = vmul.f32 %v797, %v791
        %v799 = vadd.f32 %v788, %v798
        %s800 = sld [smem:[#allocation9 + %s795]]
        %v801 = vstv %s800
        %v802 = vmul.f32 %v801, %v794
        %v803 = vadd.f32 %v799, %v802
        %v804 = vmul.f32 %v791, %v736
        %v805 = vmul.f32 %v794, %v582
        %v806 = vadd.f32 %v804, %v805
        %v807 = vmul.f32 %v794, %v736
        %v808 = vmul.f32 %v791, %v582
        %v809 = vsub.f32 %v807, %v808
        %s810 = sadd.s32 %s737, 5
        %s811 = sld [smem:[#allocation8 + %s810]]
        %v812 = vstv %s811
        %v813 = vmul.f32 %v812, %v806
        %v814 = vadd.f32 %v803, %v813
        %s815 = sld [smem:[#allocation9 + %s810]]
        %v816 = vstv %s815
        %v817 = vmul.f32 %v816, %v809
        %v818 = vadd.f32 %v814, %v817
        %v819 = vmul.f32 %v806, %v736
        %v820 = vmul.f32 %v809, %v582
        %v821 = vadd.f32 %v819, %v820
        %v822 = vmul.f32 %v809, %v736
        %v823 = vmul.f32 %v806, %v582
        %v824 = vsub.f32 %v822, %v823
        %s825 = sadd.s32 %s737, 6
        %s826 = sld [smem:[#allocation8 + %s825]]
        %v827 = vstv %s826
        %v828 = vmul.f32 %v827, %v821
        %v829 = vadd.f32 %v818, %v828
        %s830 = sld [smem:[#allocation9 + %s825]]
        %v831 = vstv %s830
        %v832 = vmul.f32 %v831, %v824
        %v833 = vadd.f32 %v829, %v832
        %v834 = vmul.f32 %v821, %v736
        %v835 = vmul.f32 %v824, %v582
        %v836 = vadd.f32 %v834, %v835
        %v837 = vmul.f32 %v824, %v736
        %v838 = vmul.f32 %v821, %v582
        %v839 = vsub.f32 %v837, %v838
        %s840 = sadd.s32 %s737, 7
        %s841 = sld [smem:[#allocation8 + %s840]]
        %v842 = vstv %s841
        %v843 = vmul.f32 %v842, %v836
        %v844 = vadd.f32 %v833, %v843
        %s845 = sld [smem:[#allocation9 + %s840]]
        %v846 = vstv %s845
        %v847 = vmul.f32 %v846, %v839
        %v848 = vadd.f32 %v844, %v847
        %vm849 = vcmp.gt.f32.partialorder %v239, 0.0
        %v850 = vsel %vm849, %v848, 0.0
        %v851 = vtanh.pop %v850
        %852 = vst [vmem:[%s232] sm:$0xff] %v851
        %s853 = sand.u32 %s114, 1
        %s854 = scalar_lea.sflag [#allocation5], %s853
        %s855 = sand.u32 %s114, 1
        %s856 = smul.addr %s855, 8
        %s857 = scalar_lea.vmem [#allocation10], %s856
        // Predicated region
        $region49: #{tpu_custom_call.1} parent=31 // pred_check
          %p858 = pneg %p124
        $region50: #{tpu_custom_call.1} parent=31 // pred_check_branch
          %860 = sbr.rel (%p858) target = $region52
        $region51: #{tpu_custom_call.1} parent=31 // pred_region
          %862 = vsyncadd %s854, 0
          %s863 = smul.addr %s26, 3
          %s864 = sadd.s32 %s27, %s863
          %s865 = smul.addr %s864, 8
          %s866 = scalar_lea.hbm %s3, %s865
          %s868 = sshll.u32 %s857, 4
          %s869 = int_to_ptr.vmem [resolvable:$true] %s868
          %s870 = sshll.u32 %s866, 4
          %s871 = int_to_ptr.hbm [resolvable:$true] %s870
          %873 = dma.vmem_to_hbm [thread:$0]  %s869, 128, %s871, %s854
        $region52: #{tpu_custom_call.1} parent=31 // pred_fallthru
          _
      $region32: #{tpu_custom_call.1} parent=5 // pred_fallthru
        _
      %p874 = scmp.le.s32.totalorder 2, %s17
      // Predicated region
      $region53: #{tpu_custom_call.1} parent=5 // pred_check
        %p875 = pneg %p874
      $region54: #{tpu_custom_call.1} parent=5 // pred_check_branch
        %877 = sbr.rel (%p875) target = $region56
      $region55: #{tpu_custom_call.1} parent=5 // pred_region
        %s878 = ssub.s32 %s17, 2
        // Predicated region
        $region57: #{tpu_custom_call.1} parent=55 // pred_check
          %p879 = pneg %p130
        $region58: #{tpu_custom_call.1} parent=55 // pred_check_branch
          %881 = sbr.rel (%p879) target = $region60
        $region59: #{tpu_custom_call.1} parent=55 // pred_region
          %s882 = sand.u32 %s115, 1
          %s883 = scalar_lea.sflag [#allocation5], %s882
          %s884 = sand.u32 %s115, 1
          %s885 = smul.addr %s884, 8
          %s886 = scalar_lea.vmem [#allocation10], %s885
          %888 = dma.done %s883, 128
        $region60: #{tpu_custom_call.1} parent=55 // pred_fallthru
          _
      $region56: #{tpu_custom_call.1} parent=5 // pred_fallthru
        _
    $region6: #{tpu_custom_call.1} parent=1 // loop_footer
      %s21 = sadd.s32 1, %s17
    $region7: #{tpu_custom_call.1} parent=1 // loop_footer_branch
      %16 = sbr.rel target = $region3
    $region8: #{tpu_custom_call.1} parent=1 // loop_exit
      _
    %889 = vsyncpa [#allocation4], 1
    %s890 = scalar_lea.sflag [#allocation4], 1
    %891 = vsyncpa %s890, 1
    %892 = vsyncpa [#allocation5], 1
    %s893 = scalar_lea.sflag [#allocation5], 1
    %894 = vsyncpa %s893, 1
    %895 = vsyncpa [#allocation6], 1
    %s896 = scalar_lea.sflag [#allocation6], 1
    %897 = vsyncpa %s896, 1
    %898 = vsyncpa [#allocation7], 1
    %s899 = scalar_lea.sflag [#allocation7], 1
    %900 = vsyncpa %s899, 1

</llo_original>
